<compile_context>
chip_gen: v6e
topology: v6e:2x2x1
jax: 0.10.0
libtpu: 0.0.40
codegen_flags: <defaults>
</compile_context>

<pallas_src>
import math
from functools import partial

import jax
import jax.numpy as jnp
from jax.experimental import pallas as pl
from jax.experimental.pallas import tpu as pltpu


# ----------------------------------------------------------------------------
# Positional-encoding table (matches the PyTorch buffer, minus the batch axis)
# ----------------------------------------------------------------------------
def build_positional_encoding_table(max_len: int, d_model: int, dtype=jnp.float32):
    """Deterministic interleaved sin/cos table, shape (max_len, d_model)."""
    position = jnp.arange(0, max_len, dtype=jnp.float32)[:, None]            # (L, 1)
    div_term = jnp.exp(
        jnp.arange(0, d_model, 2, dtype=jnp.float32) * (-math.log(10000.0) / d_model)
    )                                                                         # (D/2,)
    angles = position * div_term                                              # (L, D/2)
    pe = jnp.zeros((max_len, d_model), dtype=jnp.float32)
    pe = pe.at[:, 0::2].set(jnp.sin(angles))
    pe = pe.at[:, 1::2].set(jnp.cos(angles))
    return pe.astype(dtype)


# ----------------------------------------------------------------------------
# Standalone kernel:  out[b, s, :] = scale * x[b, s, :] + pe[s, :]
# ----------------------------------------------------------------------------
def _pos_enc_kernel(x_ref, pe_ref, o_ref, *, scale: float):
    # x_ref / o_ref: (tS, D) tile (batch block dim squeezed);  pe_ref: (tS, D).
    x = x_ref[...]
    pe = pe_ref[...]
    if scale == 1.0:
        o_ref[...] = x + pe
    else:
        o_ref[...] = x * jnp.asarray(scale, dtype=x.dtype) + pe


def _sublane_pack(itemsize: int) -> int:
    return {4: 8, 2: 16, 1: 32}.get(itemsize, 8)


def _choose_seq_tile(S: int, D: int, dtype,
                     vmem_budget_bytes: int = 12 * 1024 * 1024) -> int:
    """Largest seq tile whose *padded* VMEM footprint fits the budget.

    Counts double-buffered x-in + out + pe blocks (6 buffers total) with the
    last dim padded to a multiple of 128 lanes and rows padded to the sublane
    packing of the dtype.  12 MiB keeps us under v5e's 16 MiB default scoped
    VMEM and well under v6e/v7x's 32 MiB default.
    """
    itemsize = jnp.dtype(dtype).itemsize
    pack = _sublane_pack(itemsize)
    d_pad = -(-D // 128) * 128
    row_bytes = d_pad * itemsize
    rows = vmem_budget_bytes // (6 * row_bytes)          # 2x(x-in) + 2x(out) + 2x(pe)
    rows = max(pack, (rows // pack) * pack)
    rows = min(rows, 4096)                                # diminishing returns past this
    return S if S <= rows else int(rows)


def positional_encoding(x: jnp.ndarray, pe_table: jnp.ndarray, *,
                        scale: float = 1.0, seq_tile: int | None = None,
                        donate_x: bool = False) -> jnp.ndarray:
    """Compute scale * x + pe broadcast over batch, batch-first layout.

    x: (batch, seq_len, d_model)   (the natural embedding-output layout; equals
       the PyTorch seq-first result after its transpose, since pe broadcasts
       over batch).
    pe_table: (>= seq_len, d_model), ideally pre-built in x.dtype at model init.
    scale=1.0 reproduces PositionalEncoding.forward exactly; scale=sqrt(d_model)
    additionally fuses the model-level embedding scale.
    """
    B, S, D = x.shape
    assert pe_table.shape[0] >= S and pe_table.shape[1] == D
    pe = pe_table if pe_table.shape[0] == S else pe_table[:S]
    if pe.dtype != x.dtype:                               # no-op when table built in x.dtype
        pe = pe.astype(x.dtype)

    tS = seq_tile if seq_tile is not None else _choose_seq_tile(S, D, x.dtype)
    tS = min(tS, S)
    if tS < S:
        tS = max(8, (tS // 8) * 8)                        # (8,128) block constraint

    grid = (B, pl.cdiv(S, tS))

    return pl.pallas_call(
        partial(_pos_enc_kernel, scale=float(scale)),
        out_shape=jax.ShapeDtypeStruct((B, S, D), x.dtype),
        grid=grid,
        in_specs=[
            pl.BlockSpec((None, tS, D), lambda b, s: (b, s, 0)),   # dense (tS, D) x tile
            pl.BlockSpec((tS, D), lambda b, s: (s, 0)),            # matching pe tile
        ],
        out_specs=pl.BlockSpec((None, tS, D), lambda b, s: (b, s, 0)),
        input_output_aliases=({0: 0} if donate_x else {}),
        compiler_params=pltpu.CompilerParams(
            dimension_semantics=("parallel", "parallel"),          # both TCs on v7x
        ),
    )(x, pe)


# ----------------------------------------------------------------------------
# Fused kernel:  out[b, s, :] = emb_table[tokens[b, s], :] * sqrt(D) + pe[s, :]
# (embedding lookup + scale + positional encoding in one HBM pass)
# ----------------------------------------------------------------------------
def _embed_pe_kernel(tok_ref, emb_hbm, pe_ref, o_ref, row_buf, sems, *,
                     scale: float, seq_tile: int, seq_len: int, vocab: int):
    b = pl.program_id(0)
    si = pl.program_id(1)
    base = b * seq_len

    # Gather this tile's embedding rows straight from HBM into VMEM.
    @pl.loop(0, seq_tile)
    def _issue(r):
        seq = jnp.minimum(si * seq_tile + r, seq_len - 1)   # clamp padded tail rows
        tok = tok_ref[base + seq]
        tok = jnp.clip(tok, 0, vocab - 1)
        pltpu.make_async_copy(
            emb_hbm.at[pl.ds(tok, 1)], row_buf.at[pl.ds(r, 1)], sems.at[r]
        ).start()

    @pl.loop(0, seq_tile)
    def _wait(r):
        pltpu.make_async_copy(
            emb_hbm.at[pl.ds(0, 1)], row_buf.at[pl.ds(r, 1)], sems.at[r]
        ).wait()

    emb = row_buf[...]                                       # (tS, D)
    o_ref[...] = emb * jnp.asarray(scale, dtype=emb.dtype) + pe_ref[...]


def embed_scale_pos_encode(tokens: jnp.ndarray, emb_table: jnp.ndarray,
                           pe_table: jnp.ndarray, *, scale: float | None = None,
                           seq_tile: int | None = None) -> jnp.ndarray:
    """emb_table[tokens] * sqrt(d_model) + pe, fused in one kernel.

    tokens: (batch, seq_len) int32;  emb_table: (vocab, d_model);
    pe_table: (>= seq_len, d_model).  Output: (batch, seq_len, d_model).
    """
    B, S = tokens.shape
    V, D = emb_table.shape
    if scale is None:
        scale = math.sqrt(D)
    assert pe_table.shape[0] >= S and pe_table.shape[1] == D
    pe = pe_table if pe_table.shape[0] == S else pe_table[:S]
    if pe.dtype != emb_table.dtype:
        pe = pe.astype(emb_table.dtype)

    tS = seq_tile if seq_tile is not None else min(128, S)
    tS = min(tS, S)
    if tS < S:
        tS = max(8, (tS // 8) * 8)

    grid = (B, pl.cdiv(S, tS))
    tok_flat = tokens.reshape(-1).astype(jnp.int32)          # 1-D -> minimal SMEM padding

    return pl.pallas_call(
        partial(_embed_pe_kernel, scale=float(scale), seq_tile=tS,
                seq_len=S, vocab=V),
        out_shape=jax.ShapeDtypeStruct((B, S, D), emb_table.dtype),
        grid_spec=pltpu.PrefetchScalarGridSpec(
            num_scalar_prefetch=1,                            # token ids -> SMEM
            grid=grid,
            in_specs=[
                pl.BlockSpec(memory_space=pl.ANY),            # embedding table stays in HBM
                pl.BlockSpec((tS, D), lambda b, s, tok: (s, 0)),
            ],
            out_specs=pl.BlockSpec((None, tS, D), lambda b, s, tok: (b, s, 0)),
            scratch_shapes=[
                pltpu.VMEM((tS, D), emb_table.dtype),         # gathered rows
                pltpu.SemaphoreType.DMA((tS,)),               # one sem per in-flight row DMA
            ],
        ),
        compiler_params=pltpu.CompilerParams(
            dimension_semantics=("arbitrary", "arbitrary"),
        ),
    )(tok_flat, emb_table, pe)


# ----------------------------------------------------------------------------
# Demo / correctness check
# ----------------------------------------------------------------------------
if __name__ == "__main__":
    d_model = 128          # lane-dense last dim (multiple of 128)
    max_len = 64
    seq_len = 32
    batch = 2
    vocab = 50

    key = jax.random.PRNGKey(0)
    k_x, k_tok, k_emb = jax.random.split(key, 3)

    # Build pe once, in the activation dtype (per-forward astype eliminated).
    pe_table = build_positional_encoding_table(max_len, d_model, dtype=jnp.float32)
    pe_s = pe_table[:seq_len]
    scale = math.sqrt(d_model)

    # ---- standalone positional-encoding kernel (batch-first, dense tiles) ----
    x = jax.random.normal(k_x, (batch, seq_len, d_model), dtype=jnp.float32)
    ref_add = x + pe_s[None, :, :]
    ref_scaled = x * scale + pe_s[None, :, :]

    # 1) plain PositionalEncoding.forward semantics; auto tile -> single seq step
    out1 = jax.block_until_ready(positional_encoding(x, pe_table, scale=1.0))
    assert out1.shape == (batch, seq_len, d_model)
    assert jnp.allclose(out1, ref_add, atol=1e-6), "mismatch (scale=1, auto tile)"

    # 2) fused embedding-scale path, multi-step seq grid exercised (tS=8)
    out2 = jax.block_until_ready(
        positional_encoding(x, pe_table, scale=scale, seq_tile=8))
    assert jnp.allclose(out2, ref_scaled, atol=1e-4), "mismatch (fused scale, tiled)"

    # 3) donated-input path (x_copy is never used again after donation)
    x_copy = x + 0.0
    out3 = jax.block_until_ready(
        positional_encoding(x_copy, pe_table, scale=1.0, donate_x=True))
    assert jnp.allclose(out3, ref_add, atol=1e-6), "mismatch (donated x)"

    # ---- fused embedding lookup * sqrt(d_model) + positional encoding ----
    tokens = jax.random.randint(k_tok, (batch, seq_len), 0, vocab, dtype=jnp.int32)
    emb_table = jax.random.normal(k_emb, (vocab, d_model), dtype=jnp.float32)
    emb_table = emb_table.at[0].set(0.0)      # padding_idx = 0 row is zeros

    out4 = jax.block_until_ready(
        embed_scale_pos_encode(tokens, emb_table, pe_table, seq_tile=8))
    ref4 = emb_table[tokens] * scale + pe_s[None, :, :]
    assert out4.shape == (batch, seq_len, d_model)
    assert jnp.allclose(out4, ref4, atol=1e-4), "mismatch (fused embedding + pe)"

    print("KERNEL_OK")
</pallas_src>

<mosaic_0001>
module attributes {stable_mosaic.version = 11 : i64} {
  func.func @_pos_enc_kernel(%arg0: i32, %arg1: i32, %arg2: memref<1x32x128xf32, #tpu.memory_space<vmem>>, %arg3: memref<32x128xf32, #tpu.memory_space<vmem>>, %arg4: memref<1x32x128xf32, #tpu.memory_space<vmem>>) attributes {dimension_semantics = [#tpu.dimension_semantics<parallel>, #tpu.dimension_semantics<parallel>], iteration_bounds = array<i64: 2, 1>, scalar_prefetch = 0 : i64, scratch_operands = 0 : i64, tpu.core_type = #tpu.core_type<tc>, window_params = [{transform_indices = @transform_0, window_bounds = array<i64: 1, 32, 128>}, {transform_indices = @transform_1, window_bounds = array<i64: 32, 128>}, {transform_indices = @transform_2, window_bounds = array<i64: 1, 32, 128>}]} {
    %c0 = arith.constant 0 : index
    %c0_0 = arith.constant 0 : index
    %c0_1 = arith.constant 0 : index
    %0 = vector.load %arg2[%c0, %c0_0, %c0_1] : memref<1x32x128xf32, #tpu.memory_space<vmem>>, vector<1x32x128xf32>
    %1 = vector.shape_cast %0 : vector<1x32x128xf32> to vector<32x128xf32>
    %c0_2 = arith.constant 0 : index
    %c0_3 = arith.constant 0 : index
    %2 = vector.load %arg3[%c0_2, %c0_3] : memref<32x128xf32, #tpu.memory_space<vmem>>, vector<32x128xf32>
    %3 = arith.addf %1, %2 : vector<32x128xf32>
    %c0_4 = arith.constant 0 : index
    %c0_5 = arith.constant 0 : index
    %c0_6 = arith.constant 0 : index
    %4 = vector.load %arg4[%c0_4, %c0_5, %c0_6] : memref<1x32x128xf32, #tpu.memory_space<vmem>>, vector<1x32x128xf32>
    %5 = vector.shape_cast %4 : vector<1x32x128xf32> to vector<32x128xf32>
    %6 = vector.shape_cast %3 : vector<32x128xf32> to vector<1x32x128xf32>
    tpu.vector_store %arg4[%c0_4, %c0_5, %c0_6], %6 {strides = array<i32>} : memref<1x32x128xf32, #tpu.memory_space<vmem>>, vector<1x32x128xf32>,
    return
  }
  func.func @transform_0(%arg0: i32, %arg1: i32) -> (i32, i32, i32) {
    %c0_i32 = arith.constant 0 : i32
    %c0_i32_0 = arith.constant 0 : i32
    return %arg0, %arg1, %c0_i32 : i32, i32, i32
  }
  func.func @transform_1(%arg0: i32, %arg1: i32) -> (i32, i32) {
    %c0_i32 = arith.constant 0 : i32
    %c0_i32_0 = arith.constant 0 : i32
    return %arg1, %c0_i32 : i32, i32
  }
  func.func @transform_2(%arg0: i32, %arg1: i32) -> (i32, i32, i32) {
    %c0_i32 = arith.constant 0 : i32
    %c0_i32_0 = arith.constant 0 : i32
    return %arg0, %arg1, %c0_i32 : i32, i32, i32
  }
}

</mosaic_0001>

<llo_original>
// kernel: tpu_custom_call.1
$region0: #{tpu_custom_call.1}
  #allocation0 [shape = 'u32[]', space=smem, size = 0x4, offset = 0x4, fixed_abs, tag = 'smem constant byte address 0x4 - core index']
  #allocation1 [shape = 'u32[144,128]{1,0:T(1,128)}', space=vmem, size = 0x12000, scoped, tag = 'internal scratch']
  %s0 = inlined_call_operand.hbm [shape: f32[2,32,128], index: 0, kind: input, shape index: {}]
  %s1 = inlined_call_operand.hbm [shape: f32[32,128], index: 1, kind: input, shape index: {}]
  %s2 = inlined_call_operand.hbm [shape: f32[2,32,128], index: 2, kind: output, shape index: {}]
  %s3 = sld [smem:[#allocation0]]
  $region49: #{tpu_custom_call.1} parent=0
    _
  %s5 = ssub.s32 1, %s3
  %s6 = scalar_select 0, %s5, %s3
  $region1: #{tpu_custom_call.1} parent=0
    #allocation2 [shape = 'u8[32768]{0}', space=vmem, size = 0x8000, scoped, tag = 'input window, operand 0']
    #allocation3 [shape = 's32[2]{0}', space=sflag, size = 0x8, scoped, tag = 'scoped memory for tpu_custom_call.1']
    #allocation4 [shape = 's32[2]{0}', space=sflag, size = 0x8, scoped, tag = 'scoped memory for tpu_custom_call.1']
    #allocation5 [shape = 'u8[16384]{0}', space=vmem, size = 0x4000, scoped, tag = 'input window, operand 1, single buffered']
    #allocation6 [shape = 's32[1]{0}', space=sflag, size = 0x4, scoped, tag = 'scoped memory for tpu_custom_call.1']
    #allocation7 [shape = 'u8[32768]{0}', space=vmem, size = 0x8000, scoped, tag = 'output window, operand 0']
    %7 = vsyncpa [#allocation3], 0
    %s8 = scalar_lea.sflag [#allocation3], 1
    %9 = vsyncpa %s8, 0
    %10 = vsyncpa [#allocation6], 0
    %11 = vsyncpa [#allocation4], 0
    %s12 = scalar_lea.sflag [#allocation4], 1
    %13 = vsyncpa %s12, 0
    loop: start=0, step=1, limit=4
    $region2: #{tpu_custom_call.1} parent=1 // loop_pre_header
      _
    $region3: #{tpu_custom_call.1} parent=1 // loop_header
      %s15 = sphi 0, %s19
      %p16 = scmp.ge.s32.totalorder %s15, 4
      %s22 = sphi 0, %s34
      %s23 = sphi 0, %s30
      %s24 = sphi 0, %s22
      %s25 = sphi 0, %s23
      %s26 = sphi 0, %s24
      %s27 = sphi 0, %s25
      %s39 = sphi 0, %s41
      %s42 = sphi 0, %s39
      %s43 = sphi 0, %s42
      %s59 = sphi 0, %s43
      %s65 = sphi 0, %s67
      %s68 = sphi 0, %s65
      %s69 = sphi 0, %s68
      %s85 = sphi 0, %s69
      %s93 = sphi 0, %s95
      %s96 = sphi 0, %s93
      %s97 = sphi 0, %s96
      %s113 = sphi 0, %s97
    $region4: #{tpu_custom_call.1} parent=1 // loop_header_branch
      %18 = sbr.rel (%p16) target = $region8
    $region5: #{tpu_custom_call.1} parent=1 // loop_body
      %s20 = ssub.s32 %s15, 1
      %s21 = ssub.s32 %s15, 2
      %s28 = sadd.s32 1, %s23
      %p29 = scmp.ge.s32.totalorder %s28, 1
      %s30 = scalar_select %p29, 0, %s28
      %s31 = sadd.s32 1, %s22
      %s32 = scalar_select %p29, %s31, %s22
      %p33 = scmp.ge.s32.totalorder %s32, 2
      %s34 = scalar_select %p33, 0, %s32
      %s35 = ssub.s32 %s22, %s34
      %s36 = ssub.s32 %s23, %s30
      %s37 = sor.u32 %s35, %s36
      %p38 = scmp.eq.s32.totalorder %s37, 0
      %s40 = sadd.s32 %s39, 1
      %s41 = scalar_select %p38, %s39, %s40
      %p44 = pneg %p38
      %p45 = scmp.eq.s32.totalorder %s15, 1
      %p46 = por %p44, %p45
      %p47 = scmp.ne.s32.totalorder %s39, %s42
      %p48 = scmp.eq.s32.totalorder %s15, 0
      %p49 = por %p47, %p48
      %p50 = scmp.ne.s32.totalorder %s39, %s42
      %p51 = scmp.eq.s32.totalorder %s20, 1
      %p52 = por %p50, %p51
      %p53 = scmp.ne.s32.totalorder %s42, %s43
      %p54 = scmp.eq.s32.totalorder %s20, 0
      %p55 = por %p53, %p54
      %p56 = scmp.ne.s32.totalorder %s42, %s43
      %p57 = scmp.eq.s32.totalorder %s21, 1
      %p58 = por %p56, %p57
      %p60 = scmp.ne.s32.totalorder %s43, %s59
      %p61 = scmp.eq.s32.totalorder %s21, 0
      %p62 = por %p60, %p61
      %s63 = ssub.s32 %s23, %s30
      %p64 = scmp.eq.s32.totalorder %s63, 0
      %s66 = sadd.s32 %s65, 1
      %s67 = scalar_select %p64, %s65, %s66
      %p70 = pneg %p64
      %p71 = scmp.eq.s32.totalorder %s15, 1
      %p72 = por %p70, %p71
      %p73 = scmp.ne.s32.totalorder %s65, %s68
      %p74 = scmp.eq.s32.totalorder %s15, 0
      %p75 = por %p73, %p74
      %p76 = scmp.ne.s32.totalorder %s65, %s68
      %p77 = scmp.eq.s32.totalorder %s20, 1
      %p78 = por %p76, %p77
      %p79 = scmp.ne.s32.totalorder %s68, %s69
      %p80 = scmp.eq.s32.totalorder %s20, 0
      %p81 = por %p79, %p80
      %p82 = scmp.ne.s32.totalorder %s68, %s69
      %p83 = scmp.eq.s32.totalorder %s21, 1
      %p84 = por %p82, %p83
      %p86 = scmp.ne.s32.totalorder %s69, %s85
      %p87 = scmp.eq.s32.totalorder %s21, 0
      %p88 = por %p86, %p87
      %s89 = ssub.s32 %s22, %s34
      %s90 = ssub.s32 %s23, %s30
      %s91 = sor.u32 %s89, %s90
      %p92 = scmp.eq.s32.totalorder %s91, 0
      %s94 = sadd.s32 %s93, 1
      %s95 = scalar_select %p92, %s93, %s94
      %p98 = pneg %p92
      %p99 = scmp.eq.s32.totalorder %s15, 1
      %p100 = por %p98, %p99
      %p101 = scmp.ne.s32.totalorder %s93, %s96
      %p102 = scmp.eq.s32.totalorder %s15, 0
      %p103 = por %p101, %p102
      %p104 = scmp.ne.s32.totalorder %s93, %s96
      %p105 = scmp.eq.s32.totalorder %s20, 1
      %p106 = por %p104, %p105
      %p107 = scmp.ne.s32.totalorder %s96, %s97
      %p108 = scmp.eq.s32.totalorder %s20, 0
      %p109 = por %p107, %p108
      %p110 = scmp.ne.s32.totalorder %s96, %s97
      %p111 = scmp.eq.s32.totalorder %s21, 1
      %p112 = por %p110, %p111
      %p114 = scmp.ne.s32.totalorder %s97, %s113
      %p115 = scmp.eq.s32.totalorder %s21, 0
      %p116 = por %p114, %p115
      %p117 = scmp.le.s32.totalorder 1, %s15
      %p118 = scmp.lt.s32.totalorder %s15, 3
      %p119 = pnand %p117, %p118
      %p120 = pneg %p119
      // Predicated region
      $region9: #{tpu_custom_call.1} parent=5 // pred_check
        _
      $region10: #{tpu_custom_call.1} parent=5 // pred_check_branch
        %122 = sbr.rel (%p119) target = $region12
      $region11: #{tpu_custom_call.1} parent=5 // pred_region
        %s123 = ssub.s32 %s15, 1
        // Predicated region
        $region13: #{tpu_custom_call.1} parent=11 // pred_check
          %p124 = pneg %p81
        $region14: #{tpu_custom_call.1} parent=11 // pred_check_branch
          %126 = sbr.rel (%p124) target = $region16
        $region15: #{tpu_custom_call.1} parent=11 // pred_region
          %s127 = smul.u32 4, %s25
          %s129 = ssub.s32 512, 512
          %130 = vsyncadd [#allocation6], %s129
          %s131 = smul.addr %s127, 128
          %s132 = scalar_lea.hbm %s1, %s131
          %s133 = sshll.u32 [#allocation5], 4
          %s134 = int_to_ptr.vmem [resolvable:$true] %s133
          %139 = dma.hbm_to_vmem [thread:$0]  %s132, 512, %s134, [#allocation6], 128, 128, 8
        $region16: #{tpu_custom_call.1} parent=11 // pred_fallthru
          _
      $region12: #{tpu_custom_call.1} parent=5 // pred_fallthru
        _
      %p140 = scmp.lt.s32.totalorder %s15, 2
      // Predicated region
      $region17: #{tpu_custom_call.1} parent=5 // pred_check
        %p141 = pneg %p140
      $region18: #{tpu_custom_call.1} parent=5 // pred_check_branch
        %143 = sbr.rel (%p141) target = $region20
      $region19: #{tpu_custom_call.1} parent=5 // pred_region
        // Predicated region
        $region21: #{tpu_custom_call.1} parent=19 // pred_check
          %p144 = pneg %p49
        $region22: #{tpu_custom_call.1} parent=19 // pred_check_branch
          %146 = sbr.rel (%p144) target = $region24
        $region23: #{tpu_custom_call.1} parent=19 // pred_region
          %s147 = sand.u32 %s39, 1
          %s148 = scalar_lea.sflag [#allocation3], %s147
          %s149 = sand.u32 %s39, 1
          %s150 = smul.addr %s149, 32
          %s151 = scalar_lea.vmem [#allocation2], %s150
          %s152 = smul.u32 4, %s23
          %s154 = ssub.s32 512, 512
          %155 = vsyncadd %s148, %s154
          %s156 = smul.addr %s22, 4
          %s157 = sadd.s32 %s152, %s156
          %s158 = smul.addr %s157, 128
          %s159 = scalar_lea.hbm %s0, %s158
          %s160 = sshll.u32 %s151, 4
          %s161 = int_to_ptr.vmem [resolvable:$true] %s160
          %166 = dma.hbm_to_vmem [thread:$0]  %s159, 512, %s161, %s148, 128, 128, 8
        $region24: #{tpu_custom_call.1} parent=19 // pred_fallthru
          _
      $region20: #{tpu_custom_call.1} parent=5 // pred_fallthru
        _
      %p167 = scmp.le.s32.totalorder 1, %s15
      %p168 = scmp.lt.s32.totalorder %s15, 3
      %p169 = pnand %p167, %p168
      %p170 = pneg %p169
      // Predicated region
      $region25: #{tpu_custom_call.1} parent=5 // pred_check
        _
      $region26: #{tpu_custom_call.1} parent=5 // pred_check_branch
        %172 = sbr.rel (%p169) target = $region28
      $region27: #{tpu_custom_call.1} parent=5 // pred_region
        %s173 = ssub.s32 %s15, 1
        %s174 = sand.u32 %s42, 1
        %s175 = scalar_lea.sflag [#allocation3], %s174
        %s176 = sand.u32 %s42, 1
        %s177 = smul.addr %s176, 32
        %s178 = scalar_lea.vmem [#allocation2], %s177
        // Predicated region
        $region29: #{tpu_custom_call.1} parent=27 // pred_check
          %p179 = pneg %p55
        $region30: #{tpu_custom_call.1} parent=27 // pred_check_branch
          %181 = sbr.rel (%p179) target = $region32
        $region31: #{tpu_custom_call.1} parent=27 // pred_region
          %182 = dma.done %s175, 512
        $region32: #{tpu_custom_call.1} parent=27 // pred_fallthru
          _
        // Predicated region
        $region33: #{tpu_custom_call.1} parent=27 // pred_check
          %p183 = pneg %p81
        $region34: #{tpu_custom_call.1} parent=27 // pred_check_branch
          %185 = sbr.rel (%p183) target = $region36
        $region35: #{tpu_custom_call.1} parent=27 // pred_region
          %186 = dma.done [#allocation6], 512
        $region36: #{tpu_custom_call.1} parent=27 // pred_fallthru
          _
        %s187 = sand.u32 %s42, 1
        %s188 = scalar_lea.sflag [#allocation3], %s187
        %s189 = sand.u32 %s42, 1
        %s190 = smul.addr %s189, 32
        %s191 = scalar_lea.vmem [#allocation2], %s190
        %p192 = pneg %p55
        %p193 = pneg %p52
        %p194 = pneg %p81
        %p195 = pneg %p78
        %p196 = pneg %p109
        %p197 = pneg %p106
        %s198 = sand.u32 %s96, 1
        %s199 = scalar_lea.sflag [#allocation4], %s198
        %s200 = sand.u32 %s96, 1
        %s201 = smul.addr %s200, 32
        %s202 = scalar_lea.vmem [#allocation7], %s201
        %s203 = smul.u32 4, %s25
        %s204 = smul.u32 4, %s25
        %s205 = smul.u32 4, %s25
        %v206 = vld [vmem:[%s178] sm:$0xff]
        %v207 = vld [vmem:[%s178 + $0x8] sm:$0xff]
        %v208 = vld [vmem:[%s178 + $0x10] sm:$0xff]
        %v209 = vld [vmem:[%s178 + $0x18] sm:$0xff]
        %v210 = vld [vmem:[#allocation5] sm:$0xff]
        %v211 = vld [vmem:[#allocation5 + $0x8] sm:$0xff]
        %v212 = vld [vmem:[#allocation5 + $0x10] sm:$0xff]
        %v213 = vld [vmem:[#allocation5 + $0x18] sm:$0xff]
        %v214 = vadd.f32 %v206, %v210
        %v215 = vadd.f32 %v207, %v211
        %v216 = vadd.f32 %v208, %v212
        %v217 = vadd.f32 %v209, %v213
        %218 = vst [vmem:[%s202] sm:$0xff] %v214
        %219 = vst [vmem:[%s202 + $0x8] sm:$0xff] %v215
        %220 = vst [vmem:[%s202 + $0x10] sm:$0xff] %v216
        %221 = vst [vmem:[%s202 + $0x18] sm:$0xff] %v217
        %s222 = sand.u32 %s96, 1
        %s223 = scalar_lea.sflag [#allocation4], %s222
        %s224 = sand.u32 %s96, 1
        %s225 = smul.addr %s224, 32
        %s226 = scalar_lea.vmem [#allocation7], %s225
        // Predicated region
        $region37: #{tpu_custom_call.1} parent=27 // pred_check
          %p227 = pneg %p106
        $region38: #{tpu_custom_call.1} parent=27 // pred_check_branch
          %229 = sbr.rel (%p227) target = $region40
        $region39: #{tpu_custom_call.1} parent=27 // pred_region
          %s230 = smul.u32 4, %s25
          %s232 = ssub.s32 512, 512
          %233 = vsyncadd %s223, %s232
          %s234 = smul.addr %s24, 4
          %s235 = sadd.s32 %s230, %s234
          %s236 = smul.addr %s235, 128
          %s237 = scalar_lea.hbm %s2, %s236
          %s238 = sshll.u32 %s226, 4
          %s239 = int_to_ptr.vmem [resolvable:$true] %s238
          %244 = dma.vmem_to_hbm [thread:$0]  %s239, 512, %s237, %s223, 128, 128, 8
        $region40: #{tpu_custom_call.1} parent=27 // pred_fallthru
          _
      $region28: #{tpu_custom_call.1} parent=5 // pred_fallthru
        _
      %p245 = scmp.le.s32.totalorder 2, %s15
      // Predicated region
      $region41: #{tpu_custom_call.1} parent=5 // pred_check
        %p246 = pneg %p245
      $region42: #{tpu_custom_call.1} parent=5 // pred_check_branch
        %248 = sbr.rel (%p246) target = $region44
      $region43: #{tpu_custom_call.1} parent=5 // pred_region
        %s249 = ssub.s32 %s15, 2
        // Predicated region
        $region45: #{tpu_custom_call.1} parent=43 // pred_check
          %p250 = pneg %p112
        $region46: #{tpu_custom_call.1} parent=43 // pred_check_branch
          %252 = sbr.rel (%p250) target = $region48
        $region47: #{tpu_custom_call.1} parent=43 // pred_region
          %s253 = sand.u32 %s97, 1
          %s254 = scalar_lea.sflag [#allocation4], %s253
          %s255 = sand.u32 %s97, 1
          %s256 = smul.addr %s255, 32
          %s257 = scalar_lea.vmem [#allocation7], %s256
          %258 = dma.done %s254, 512
        $region48: #{tpu_custom_call.1} parent=43 // pred_fallthru
          _
      $region44: #{tpu_custom_call.1} parent=5 // pred_fallthru
        _
    $region6: #{tpu_custom_call.1} parent=1 // loop_footer
      %s19 = sadd.s32 1, %s15
    $region7: #{tpu_custom_call.1} parent=1 // loop_footer_branch
      %14 = sbr.rel target = $region3
    $region8: #{tpu_custom_call.1} parent=1 // loop_exit
      _
    %259 = vsyncpa [#allocation3], 1
    %s260 = scalar_lea.sflag [#allocation3], 1
    %261 = vsyncpa %s260, 1
    %262 = vsyncpa [#allocation6], 1
    %263 = vsyncpa [#allocation4], 1
    %s264 = scalar_lea.sflag [#allocation4], 1
    %265 = vsyncpa %s264, 1

</llo_original>
